<compile_context>
chip_gen: v7x
topology: tpu7x:2x2x1
jax: 0.10.0
libtpu: 0.0.40
codegen_flags: <defaults>
</compile_context>

<pallas_src>
import jax
import jax.numpy as jnp
from jax.experimental import pallas as pl
from jax.experimental.pallas import tpu as pltpu

HIDDEN = 100          # logical hidden size of the PyTorch module
H_PAD = 128           # lane-aligned padded hidden size
W_FUSED = 2 * H_PAD   # 256: m-branch in cols [0,128), s-branch in cols [128,256)


def _disc_kernel(x_ref, w3_ref, b3_ref, w4_ref, b4_ref, wf_ref, bf_ref, o_ref):
    # x:  (TILE_N, 128)    w3: (128, 256)   w4: (256, 256)   wf: (256, 2)
    x = x_ref[...]
    h = jnp.dot(x, w3_ref[...], preferred_element_type=jnp.float32) + b3_ref[...]
    h = jnp.maximum(h, 0.0)                                   # ReLU (BN already folded)
    h = jnp.dot(h, w4_ref[...], preferred_element_type=jnp.float32) + b4_ref[...]
    h = jnp.maximum(h, 0.0)
    o_ref[...] = (
        jnp.dot(h, wf_ref[...], preferred_element_type=jnp.float32) + bf_ref[...]
    )


def _fold_linear_bn(w, b, bn, eps=1e-5):
    """Fold Linear (w:(out,in), b:(out,)) + inference BatchNorm into W':(in,out), b':(out,)."""
    gamma, beta, mean, var = bn
    scale = gamma / jnp.sqrt(var + eps)
    w_folded = w.T * scale[None, :]
    b_folded = b * scale + (beta - mean * scale)
    return w_folded, b_folded


def _pack_params(params):
    """Build the fused / zero-padded weight & bias slabs consumed by the kernel."""
    H = HIDDEN
    w3m, b3m = _fold_linear_bn(*params["fc3_m"], params["bn3_m"])
    w3s, b3s = _fold_linear_bn(*params["fc3_s"], params["bn3_s"])
    w4m, b4m = _fold_linear_bn(*params["fc4_m"], params["bn4_m"])
    w4s, b4s = _fold_linear_bn(*params["fc4_s"], params["bn4_s"])

    # Layer 3: (128, 256), m-branch in cols [0,128), s-branch in cols [128,256).
    w3 = jnp.zeros((H_PAD, W_FUSED), jnp.float32)
    w3 = w3.at[:H, :H].set(w3m).at[:H, H_PAD:H_PAD + H].set(w3s)
    b3 = jnp.zeros((1, W_FUSED), jnp.float32)
    b3 = b3.at[0, :H].set(b3m).at[0, H_PAD:H_PAD + H].set(b3s)

    # Layer 4: block-diagonal (256, 256).
    w4 = jnp.zeros((W_FUSED, W_FUSED), jnp.float32)
    w4 = w4.at[:H, :H].set(w4m).at[H_PAD:H_PAD + H, H_PAD:H_PAD + H].set(w4s)
    b4 = jnp.zeros((1, W_FUSED), jnp.float32)
    b4 = b4.at[0, :H].set(b4m).at[0, H_PAD:H_PAD + H].set(b4s)

    # Final projections fused into a single (256, 2) weight (lane-narrow output kept).
    wfm, bfm = params["fc_final_m"]   # (1, 100), (1,)
    wfs, bfs = params["fc_final_s"]
    wf = jnp.zeros((W_FUSED, 2), jnp.float32)
    wf = wf.at[:H, 0].set(wfm[0]).at[H_PAD:H_PAD + H, 1].set(wfs[0])
    bf = jnp.stack([bfm[0], bfs[0]]).reshape(1, 2).astype(jnp.float32)

    return w3, b3, w4, b4, wf, bf


def _const_spec(shape):
    return pl.BlockSpec(shape, lambda i: (0,) * len(shape))


def domain_d_disc_forward(x, domain, params, *, tile_n=512):
    """Pallas implementation of DomainDDisc.forward((x, domain)) in eval mode."""
    del domain  # unsqueezed but never used in the reference forward
    N, H = x.shape
    assert H == HIDDEN

    w3, b3, w4, b4, wf, bf = _pack_params(params)

    # Batch tile: multiple of 8 sublanes, clamped for small batches.
    tile_n = max(8, min(tile_n, ((N + 7) // 8) * 8))
    n_pad = ((N + tile_n - 1) // tile_n) * tile_n
    x_pad = jnp.zeros((n_pad, H_PAD), jnp.float32).at[:N, :HIDDEN].set(x)

    grid = (n_pad // tile_n,)

    # TODO(synk): cast x / weight slabs to bf16 for the matmuls (f32 accumulation)
    # for extra MXU throughput, especially on v5e, if the discriminator tolerates it.
    out = pl.pallas_call(
        _disc_kernel,
        out_shape=jax.ShapeDtypeStruct((n_pad, 2), jnp.float32),
        grid=grid,
        in_specs=[
            pl.BlockSpec((tile_n, H_PAD), lambda i: (i, 0)),   # x tile, pipelined
            _const_spec(w3.shape), _const_spec(b3.shape),      # weights: resident
            _const_spec(w4.shape), _const_spec(b4.shape),
            _const_spec(wf.shape), _const_spec(bf.shape),
        ],
        out_specs=pl.BlockSpec((tile_n, 2), lambda i: (i, 0)),
        compiler_params=pltpu.CompilerParams(
            dimension_semantics=("parallel",),
        ),
    )(x_pad, w3, b3, w4, b4, wf, bf)

    return out[:N, 0:1], out[:N, 1:2]


def init_params(key, hidden=HIDDEN):
    """Deterministic parameter init (PyTorch-style uniform bounds for Linear)."""
    params = {}
    keys = jax.random.split(key, 12)

    def linear(kw, kb, fan_in, fan_out):
        bound = 1.0 / jnp.sqrt(fan_in)
        w = jax.random.uniform(kw, (fan_out, fan_in), jnp.float32, -bound, bound)
        b = jax.random.uniform(kb, (fan_out,), jnp.float32, -bound, bound)
        return w, b

    params["fc3_m"] = linear(keys[0], keys[1], hidden, hidden)
    params["fc3_s"] = linear(keys[2], keys[3], hidden, hidden)
    params["fc4_m"] = linear(keys[4], keys[5], hidden, hidden)
    params["fc4_s"] = linear(keys[6], keys[7], hidden, hidden)
    params["fc_final_m"] = linear(keys[8], keys[9], hidden, 1)
    params["fc_final_s"] = linear(keys[10], keys[11], hidden, 1)

    # BatchNorm1d: (gamma, beta, running_mean, running_var).
    bn = (
        jnp.ones((hidden,), jnp.float32),
        jnp.zeros((hidden,), jnp.float32),
        jnp.zeros((hidden,), jnp.float32),
        jnp.ones((hidden,), jnp.float32),
    )
    for name in ("bn3_m", "bn3_s", "bn4_m", "bn4_s"):
        params[name] = bn
    return params


def reference_forward(x, params):
    """Plain-JAX reference (unfused, unfolded) for correctness checking."""
    def lin(h, wb):
        return h @ wb[0].T + wb[1]

    def bn(h, p, eps=1e-5):
        gamma, beta, mean, var = p
        return (h - mean) / jnp.sqrt(var + eps) * gamma + beta

    xm = jax.nn.relu(bn(lin(x, params["fc3_m"]), params["bn3_m"]))
    xs = jax.nn.relu(bn(lin(x, params["fc3_s"]), params["bn3_s"]))
    xm = jax.nn.relu(bn(lin(xm, params["fc4_m"]), params["bn4_m"]))
    xs = jax.nn.relu(bn(lin(xs, params["fc4_s"]), params["bn4_s"]))
    return lin(xm, params["fc_final_m"]), lin(xs, params["fc_final_s"])


if __name__ == "__main__":
    key = jax.random.PRNGKey(0)
    k_x, k_d, k_p = jax.random.split(key, 3)

    N = 8  # small batch
    x = jax.random.normal(k_x, (N, HIDDEN), jnp.float32)
    domain = jax.random.uniform(k_d, (N,), jnp.float32)
    params = init_params(k_p)

    out_m, out_s = domain_d_disc_forward(x, domain, params)
    out_m = jax.block_until_ready(out_m)
    out_s = jax.block_until_ready(out_s)

    ref_m, ref_s = reference_forward(x, params)
    assert out_m.shape == (N, 1) and out_s.shape == (N, 1)
    assert jnp.allclose(out_m, ref_m, atol=5e-4, rtol=5e-4)
    assert jnp.allclose(out_s, ref_s, atol=5e-4, rtol=5e-4)

    print("KERNEL_OK")
</pallas_src>

<mosaic_0001>
module attributes {stable_mosaic.version = 11 : i64} {
  func.func @_disc_kernel(%arg0: i32, %arg1: memref<8x128xf32, #tpu.memory_space<vmem>>, %arg2: memref<128x256xf32, #tpu.memory_space<vmem>>, %arg3: memref<1x256xf32, #tpu.memory_space<vmem>>, %arg4: memref<256x256xf32, #tpu.memory_space<vmem>>, %arg5: memref<1x256xf32, #tpu.memory_space<vmem>>, %arg6: memref<256x2xf32, #tpu.memory_space<vmem>>, %arg7: memref<1x2xf32, #tpu.memory_space<vmem>>, %arg8: memref<8x2xf32, #tpu.memory_space<vmem>>) attributes {dimension_semantics = [#tpu.dimension_semantics<parallel>], iteration_bounds = array<i64: 1>, scalar_prefetch = 0 : i64, scratch_operands = 0 : i64, tpu.core_type = #tpu.core_type<tc>, window_params = [{transform_indices = @transform_0, window_bounds = array<i64: 8, 128>}, {pipeline_mode = #tpu.pipeline_mode<synchronous>, transform_indices = @transform_1, window_bounds = array<i64: 128, 256>}, {pipeline_mode = #tpu.pipeline_mode<synchronous>, transform_indices = @transform_2, window_bounds = array<i64: 1, 256>}, {pipeline_mode = #tpu.pipeline_mode<synchronous>, transform_indices = @transform_3, window_bounds = array<i64: 256, 256>}, {pipeline_mode = #tpu.pipeline_mode<synchronous>, transform_indices = @transform_4, window_bounds = array<i64: 1, 256>}, {pipeline_mode = #tpu.pipeline_mode<synchronous>, transform_indices = @transform_5, window_bounds = array<i64: 256, 2>}, {pipeline_mode = #tpu.pipeline_mode<synchronous>, transform_indices = @transform_6, window_bounds = array<i64: 1, 2>}, {transform_indices = @transform_7, window_bounds = array<i64: 8, 2>}]} {
    %c0 = arith.constant 0 : index
    %c0_0 = arith.constant 0 : index
    %0 = vector.load %arg1[%c0, %c0_0] : memref<8x128xf32, #tpu.memory_space<vmem>>, vector<8x128xf32>
    %c0_1 = arith.constant 0 : index
    %c0_2 = arith.constant 0 : index
    %1 = vector.load %arg2[%c0_1, %c0_2] : memref<128x256xf32, #tpu.memory_space<vmem>>, vector<128x256xf32>
    %cst = arith.constant dense<0.000000e+00> : vector<8x256xf32>
    %2 = tpu.matmul %0, %1, %cst {dimension_numbers = #tpu.dot_dimension_numbers<[1], [0], [0], [1], [0, 0, 1, 1], [], []>} : vector<8x128xf32>, vector<128x256xf32>, vector<8x256xf32> -> vector<8x256xf32>
    %c0_3 = arith.constant 0 : index
    %c0_4 = arith.constant 0 : index
    %3 = vector.load %arg3[%c0_3, %c0_4] : memref<1x256xf32, #tpu.memory_space<vmem>>, vector<1x256xf32>
    %4 = vector.broadcast %3 : vector<1x256xf32> to vector<8x256xf32>
    %5 = arith.addf %2, %4 : vector<8x256xf32>
    %cst_5 = arith.constant 0.000000e+00 : f32
    %6 = vector.broadcast %cst_5 : f32 to vector<8x256xf32>
    %7 = arith.maximumf %5, %6 : vector<8x256xf32>
    %c0_6 = arith.constant 0 : index
    %c0_7 = arith.constant 0 : index
    %8 = vector.load %arg4[%c0_6, %c0_7] : memref<256x256xf32, #tpu.memory_space<vmem>>, vector<256x256xf32>
    %cst_8 = arith.constant dense<0.000000e+00> : vector<8x256xf32>
    %9 = tpu.matmul %7, %8, %cst_8 {dimension_numbers = #tpu.dot_dimension_numbers<[1], [0], [0], [1], [0, 0, 1, 1], [], []>} : vector<8x256xf32>, vector<256x256xf32>, vector<8x256xf32> -> vector<8x256xf32>
    %c0_9 = arith.constant 0 : index
    %c0_10 = arith.constant 0 : index
    %10 = vector.load %arg5[%c0_9, %c0_10] : memref<1x256xf32, #tpu.memory_space<vmem>>, vector<1x256xf32>
    %11 = vector.broadcast %10 : vector<1x256xf32> to vector<8x256xf32>
    %12 = arith.addf %9, %11 : vector<8x256xf32>
    %cst_11 = arith.constant 0.000000e+00 : f32
    %13 = vector.broadcast %cst_11 : f32 to vector<8x256xf32>
    %14 = arith.maximumf %12, %13 : vector<8x256xf32>
    %c0_12 = arith.constant 0 : index
    %c0_13 = arith.constant 0 : index
    %15 = vector.load %arg6[%c0_12, %c0_13] : memref<256x2xf32, #tpu.memory_space<vmem>>, vector<256x2xf32>
    %cst_14 = arith.constant dense<0.000000e+00> : vector<8x2xf32>
    %16 = tpu.matmul %14, %15, %cst_14 {dimension_numbers = #tpu.dot_dimension_numbers<[1], [0], [0], [1], [0, 0, 1, 1], [], []>} : vector<8x256xf32>, vector<256x2xf32>, vector<8x2xf32> -> vector<8x2xf32>
    %c0_15 = arith.constant 0 : index
    %c0_16 = arith.constant 0 : index
    %17 = vector.load %arg7[%c0_15, %c0_16] : memref<1x2xf32, #tpu.memory_space<vmem>>, vector<1x2xf32>
    %18 = vector.broadcast %17 : vector<1x2xf32> to vector<8x2xf32>
    %19 = arith.addf %16, %18 : vector<8x2xf32>
    %c0_17 = arith.constant 0 : index
    %c0_18 = arith.constant 0 : index
    %20 = vector.load %arg8[%c0_17, %c0_18] : memref<8x2xf32, #tpu.memory_space<vmem>>, vector<8x2xf32>
    tpu.vector_store %arg8[%c0_17, %c0_18], %19 {strides = array<i32>} : memref<8x2xf32, #tpu.memory_space<vmem>>, vector<8x2xf32>,
    return
  }
  func.func @transform_0(%arg0: i32) -> (i32, i32) {
    %c0_i32 = arith.constant 0 : i32
    %c0_i32_0 = arith.constant 0 : i32
    return %arg0, %c0_i32 : i32, i32
  }
  func.func @transform_1(%arg0: i32) -> (i32, i32) {
    %c0_i32 = arith.constant 0 : i32
    %c0_i32_0 = arith.constant 0 : i32
    %c0_i32_1 = arith.constant 0 : i32
    return %c0_i32, %c0_i32_0 : i32, i32
  }
  func.func @transform_2(%arg0: i32) -> (i32, i32) {
    %c0_i32 = arith.constant 0 : i32
    %c0_i32_0 = arith.constant 0 : i32
    %c0_i32_1 = arith.constant 0 : i32
    return %c0_i32, %c0_i32_0 : i32, i32
  }
  func.func @transform_3(%arg0: i32) -> (i32, i32) {
    %c0_i32 = arith.constant 0 : i32
    %c0_i32_0 = arith.constant 0 : i32
    %c0_i32_1 = arith.constant 0 : i32
    return %c0_i32, %c0_i32_0 : i32, i32
  }
  func.func @transform_4(%arg0: i32) -> (i32, i32) {
    %c0_i32 = arith.constant 0 : i32
    %c0_i32_0 = arith.constant 0 : i32
    %c0_i32_1 = arith.constant 0 : i32
    return %c0_i32, %c0_i32_0 : i32, i32
  }
  func.func @transform_5(%arg0: i32) -> (i32, i32) {
    %c0_i32 = arith.constant 0 : i32
    %c0_i32_0 = arith.constant 0 : i32
    %c0_i32_1 = arith.constant 0 : i32
    return %c0_i32, %c0_i32_0 : i32, i32
  }
  func.func @transform_6(%arg0: i32) -> (i32, i32) {
    %c0_i32 = arith.constant 0 : i32
    %c0_i32_0 = arith.constant 0 : i32
    %c0_i32_1 = arith.constant 0 : i32
    return %c0_i32, %c0_i32_0 : i32, i32
  }
  func.func @transform_7(%arg0: i32) -> (i32, i32) {
    %c0_i32 = arith.constant 0 : i32
    %c0_i32_0 = arith.constant 0 : i32
    return %arg0, %c0_i32 : i32, i32
  }
}

</mosaic_0001>

<llo_original>
// kernel: tpu_custom_call.1
$region0: #{tpu_custom_call.1}
  #allocation0 [shape = 'u32[]', space=smem, size = 0x4, offset = 0x4, fixed_abs, tag = 'smem constant byte address 0x4 - core index']
  #allocation1 [shape = 'u32[144,128]{1,0:T(1,128)}', space=vmem, size = 0x12000, scoped, tag = 'internal scratch']
  %s0 = inlined_call_operand.hbm [shape: f32[8,128], index: 0, kind: input, shape index: {}]
  %s1 = inlined_call_operand.vmem [shape: f32[128,256], index: 1, kind: input, shape index: {}]
  %s2 = inlined_call_operand.vmem [shape: f32[1,256], index: 2, kind: input, shape index: {}]
  %s3 = inlined_call_operand.hbm [shape: f32[256,256], index: 3, kind: input, shape index: {}]
  %s4 = inlined_call_operand.vmem [shape: f32[1,256], index: 4, kind: input, shape index: {}]
  %s5 = inlined_call_operand.vmem [shape: f32[256,2], index: 5, kind: input, shape index: {}]
  %s6 = inlined_call_operand.vmem [shape: f32[1,2], index: 6, kind: input, shape index: {}]
  %s7 = inlined_call_operand.vmem [shape: f32[8,2], index: 7, kind: output, shape index: {}]
  %s8 = sld [smem:[#allocation0]]
  $region46: #{tpu_custom_call.1} parent=0
    _
  %s10 = ssub.s32 1, %s8
  %s11 = scalar_select 0, %s10, %s8
  $region1: #{tpu_custom_call.1} parent=0
    #allocation2 [shape = 'u8[4096]{0}', space=vmem, size = 0x1000, scoped, tag = 'input window, operand 0, single buffered']
    #allocation3 [shape = 's32[1]{0}', space=sflag, size = 0x4, scoped, tag = 'scoped memory for tpu_custom_call.1']
    #allocation4 [shape = 'u8[262144]{0}', space=vmem, size = 0x40000, scoped, tag = 'input window, operand 3, single buffered']
    #allocation5 [shape = 's32[1]{0}', space=sflag, size = 0x4, scoped, tag = 'scoped memory for tpu_custom_call.1']
    %12 = vsyncpa [#allocation3], 0
    %13 = vsyncpa [#allocation5], 0
    // Predicated region
    $region2: #{tpu_custom_call.1} parent=1 // pred_check
      _
    $region3: #{tpu_custom_call.1} parent=1 // pred_check_branch
      %15 = sbr.rel (0) target = $region5
    $region4: #{tpu_custom_call.1} parent=1 // pred_region
      %s17 = ssub.s32 128, 128
      %18 = vsyncadd [#allocation3], %s17
      %s20 = sshll.u32 [#allocation2], 4
      %s21 = int_to_ptr.vmem [resolvable:$true] %s20
      %23 = dma.hbm_to_vmem [thread:$0]  %s0, 128, %s21, [#allocation3]
    $region5: #{tpu_custom_call.1} parent=1 // pred_fallthru
      _
    // Predicated region
    $region6: #{tpu_custom_call.1} parent=1 // pred_check
      _
    $region7: #{tpu_custom_call.1} parent=1 // pred_check_branch
      %25 = sbr.rel (0) target = $region9
    $region8: #{tpu_custom_call.1} parent=1 // pred_region
      _
    $region9: #{tpu_custom_call.1} parent=1 // pred_fallthru
      _
    // Predicated region
    $region10: #{tpu_custom_call.1} parent=1 // pred_check
      _
    $region11: #{tpu_custom_call.1} parent=1 // pred_check_branch
      %27 = sbr.rel (0) target = $region13
    $region12: #{tpu_custom_call.1} parent=1 // pred_region
      _
    $region13: #{tpu_custom_call.1} parent=1 // pred_fallthru
      _
    // Predicated region
    $region14: #{tpu_custom_call.1} parent=1 // pred_check
      _
    $region15: #{tpu_custom_call.1} parent=1 // pred_check_branch
      %29 = sbr.rel (0) target = $region17
    $region16: #{tpu_custom_call.1} parent=1 // pred_region
      %s31 = ssub.s32 8192, 8192
      %32 = vsyncadd [#allocation5], %s31
      %s33 = sshll.u32 [#allocation4], 4
      %s34 = int_to_ptr.vmem [resolvable:$true] %s33
      %39 = dma.hbm_to_vmem [thread:$0]  %s3, 8192, %s34, [#allocation5], 256, 256, 16
    $region17: #{tpu_custom_call.1} parent=1 // pred_fallthru
      _
    // Predicated region
    $region18: #{tpu_custom_call.1} parent=1 // pred_check
      _
    $region19: #{tpu_custom_call.1} parent=1 // pred_check_branch
      %41 = sbr.rel (0) target = $region21
    $region20: #{tpu_custom_call.1} parent=1 // pred_region
      _
    $region21: #{tpu_custom_call.1} parent=1 // pred_fallthru
      _
    // Predicated region
    $region22: #{tpu_custom_call.1} parent=1 // pred_check
      _
    $region23: #{tpu_custom_call.1} parent=1 // pred_check_branch
      %43 = sbr.rel (0) target = $region25
    $region24: #{tpu_custom_call.1} parent=1 // pred_region
      _
    $region25: #{tpu_custom_call.1} parent=1 // pred_fallthru
      _
    // Predicated region
    $region26: #{tpu_custom_call.1} parent=1 // pred_check
      _
    $region27: #{tpu_custom_call.1} parent=1 // pred_check_branch
      %45 = sbr.rel (0) target = $region29
    $region28: #{tpu_custom_call.1} parent=1 // pred_region
      _
    $region29: #{tpu_custom_call.1} parent=1 // pred_fallthru
      _
    // Predicated region
    $region30: #{tpu_custom_call.1} parent=1 // pred_check
      _
    $region31: #{tpu_custom_call.1} parent=1 // pred_check_branch
      %47 = sbr.rel (0) target = $region33
    $region32: #{tpu_custom_call.1} parent=1 // pred_region
      %48 = dma.done [#allocation3], 128
    $region33: #{tpu_custom_call.1} parent=1 // pred_fallthru
      _
    // Predicated region
    $region34: #{tpu_custom_call.1} parent=1 // pred_check
      _
    $region35: #{tpu_custom_call.1} parent=1 // pred_check_branch
      %50 = sbr.rel (0) target = $region37
    $region36: #{tpu_custom_call.1} parent=1 // pred_region
      %51 = dma.done [#allocation5], 8192
    $region37: #{tpu_custom_call.1} parent=1 // pred_fallthru
      _
    %v52 = vld [vmem:[#allocation2] sm:$0xff]
    %v53 = vld [vmem:[%s1] sm:$0xff]
    %v54 = vld [vmem:[%s1 + $0x8] sm:$0xff]
    %v55 = vld [vmem:[%s1 + $0x10] sm:$0xff]
    %v56 = vld [vmem:[%s1 + $0x18] sm:$0xff]
    %v57 = vld [vmem:[%s1 + $0x20] sm:$0xff]
    %v58 = vld [vmem:[%s1 + $0x28] sm:$0xff]
    %v59 = vld [vmem:[%s1 + $0x30] sm:$0xff]
    %v60 = vld [vmem:[%s1 + $0x38] sm:$0xff]
    %v61 = vld [vmem:[%s1 + $0x40] sm:$0xff]
    %v62 = vld [vmem:[%s1 + $0x48] sm:$0xff]
    %v63 = vld [vmem:[%s1 + $0x50] sm:$0xff]
    %v64 = vld [vmem:[%s1 + $0x58] sm:$0xff]
    %v65 = vld [vmem:[%s1 + $0x60] sm:$0xff]
    %v66 = vld [vmem:[%s1 + $0x68] sm:$0xff]
    %v67 = vld [vmem:[%s1 + $0x70] sm:$0xff]
    %v68 = vld [vmem:[%s1 + $0x78] sm:$0xff]
    %v69 = vld [vmem:[%s1 + $0x80] sm:$0xff]
    %v70 = vld [vmem:[%s1 + $0x88] sm:$0xff]
    %v71 = vld [vmem:[%s1 + $0x90] sm:$0xff]
    %v72 = vld [vmem:[%s1 + $0x98] sm:$0xff]
    %v73 = vld [vmem:[%s1 + $0xa0] sm:$0xff]
    %v74 = vld [vmem:[%s1 + $0xa8] sm:$0xff]
    %v75 = vld [vmem:[%s1 + $0xb0] sm:$0xff]
    %v76 = vld [vmem:[%s1 + $0xb8] sm:$0xff]
    %v77 = vld [vmem:[%s1 + $0xc0] sm:$0xff]
    %v78 = vld [vmem:[%s1 + $0xc8] sm:$0xff]
    %v79 = vld [vmem:[%s1 + $0xd0] sm:$0xff]
    %v80 = vld [vmem:[%s1 + $0xd8] sm:$0xff]
    %v81 = vld [vmem:[%s1 + $0xe0] sm:$0xff]
    %v82 = vld [vmem:[%s1 + $0xe8] sm:$0xff]
    %v83 = vld [vmem:[%s1 + $0xf0] sm:$0xff]
    %v84 = vld [vmem:[%s1 + $0xf8] sm:$0xff]
    %v85 = vld [vmem:[%s2] sm:$0x3]
    %v87 = vlaneseq
    %v88 = vshrl.u32 %v87, 7
    %v89 = vsub.s32 0, %v88
    %v90 = vrot.slane %v85, %v89
    %v91 = vlaneseq
    %v92 = vshrl.u32 %v91, 7
    %v93 = vsub.s32 1, %v92
    %v94 = vrot.slane %v85, %v93
    %97 = vmatprep.subr.mxu0 %v54
    %98 = vmatpush1.msra.mxu0 %v53
    %99 = vmatprep.subr.mxu0 %v56
    %100 = vmatpush1.msra.mxu0 %v55
    %101 = vmatprep.subr.mxu0 %v58
    %102 = vmatpush1.msra.mxu0 %v57
    %103 = vmatprep.subr.mxu0 %v60
    %104 = vmatpush1.msra.mxu0 %v59
    %105 = vmatprep.subr.mxu0 %v62
    %106 = vmatpush1.msra.mxu0 %v61
    %107 = vmatprep.subr.mxu0 %v64
    %108 = vmatpush1.msra.mxu0 %v63
    %109 = vmatprep.subr.mxu0 %v66
    %110 = vmatpush1.msra.mxu0 %v65
    %111 = vmatprep.subr.mxu0 %v68
    %112 = vmatpush1.msra.mxu0 %v67
    %113 = vmatprep.subr.mxu0 %v70
    %114 = vmatpush1.msra.mxu0 %v69
    %115 = vmatprep.subr.mxu0 %v72
    %116 = vmatpush1.msra.mxu0 %v71
    %117 = vmatprep.subr.mxu0 %v74
    %118 = vmatpush1.msra.mxu0 %v73
    %119 = vmatprep.subr.mxu0 %v76
    %120 = vmatpush1.msra.mxu0 %v75
    %121 = vmatprep.subr.mxu0 %v78
    %122 = vmatpush1.msra.mxu0 %v77
    %123 = vmatprep.subr.mxu0 %v80
    %124 = vmatpush1.msra.mxu0 %v79
    %125 = vmatprep.subr.mxu0 %v82
    %126 = vmatpush1.msra.mxu0 %v81
    %127 = vmatprep.subr.mxu0 %v84
    %128 = vmatpush1.msra.mxu0 %v83
    %129 = vmatprep.subr.mxu0 0.0
    %130 = vmatpush1.msra.mxu0 0.0
    %131 = vmatprep.subr.mxu0 0.0
    %132 = vmatpush1.msra.mxu0 0.0
    %133 = vmatprep.subr.mxu0 0.0
    %134 = vmatpush1.msra.mxu0 0.0
    %135 = vmatprep.subr.mxu0 0.0
    %136 = vmatpush1.msra.mxu0 0.0
    %137 = vmatprep.subr.mxu0 0.0
    %138 = vmatpush1.msra.mxu0 0.0
    %139 = vmatprep.subr.mxu0 0.0
    %140 = vmatpush1.msra.mxu0 0.0
    %141 = vmatprep.subr.mxu0 0.0
    %142 = vmatpush1.msra.mxu0 0.0
    %143 = vmatprep.subr.mxu0 0.0
    %144 = vmatpush1.msra.mxu0 0.0
    %145 = vmatprep.subr.mxu0 0.0
    %146 = vmatpush1.msra.mxu0 0.0
    %147 = vmatprep.subr.mxu0 0.0
    %148 = vmatpush1.msra.mxu0 0.0
    %149 = vmatprep.subr.mxu0 0.0
    %150 = vmatpush1.msra.mxu0 0.0
    %151 = vmatprep.subr.mxu0 0.0
    %152 = vmatpush1.msra.mxu0 0.0
    %153 = vmatprep.subr.mxu0 0.0
    %154 = vmatpush1.msra.mxu0 0.0
    %155 = vmatprep.subr.mxu0 0.0
    %156 = vmatpush1.msra.mxu0 0.0
    %157 = vmatprep.subr.mxu0 0.0
    %158 = vmatpush1.msra.mxu0 0.0
    %159 = vmatprep.subr.mxu0 0.0
    %160 = vmatpush1.msra.mxu0 0.0
    %161 = vmatprep.mubr.f32.mxu0 0.0
    %162 = vmatmul.mubr.f32.gmra.mrb[0].mxu0 %v52
    %v163 = vpop.f32.mrb[0].mxu0
    %v164 = vadd.f32 %v90, %v163
    %v165 = vpop.f32.mrb[0].mxu0
    %v166 = vadd.f32 %v94, %v165
    %167 = vdwg.mxu0
    %v168 = vmax.f32 %v164, 0.0
    %v169 = vmax.f32 %v166, 0.0
    %v170 = vld [vmem:[#allocation4] sm:$0xff]
    %v171 = vld [vmem:[#allocation4 + $0x8] sm:$0xff]
    %v172 = vld [vmem:[#allocation4 + $0x10] sm:$0xff]
    %v173 = vld [vmem:[#allocation4 + $0x18] sm:$0xff]
    %v174 = vld [vmem:[#allocation4 + $0x20] sm:$0xff]
    %v175 = vld [vmem:[#allocation4 + $0x28] sm:$0xff]
    %v176 = vld [vmem:[#allocation4 + $0x30] sm:$0xff]
    %v177 = vld [vmem:[#allocation4 + $0x38] sm:$0xff]
    %v178 = vld [vmem:[#allocation4 + $0x40] sm:$0xff]
    %v179 = vld [vmem:[#allocation4 + $0x48] sm:$0xff]
    %v180 = vld [vmem:[#allocation4 + $0x50] sm:$0xff]
    %v181 = vld [vmem:[#allocation4 + $0x58] sm:$0xff]
    %v182 = vld [vmem:[#allocation4 + $0x60] sm:$0xff]
    %v183 = vld [vmem:[#allocation4 + $0x68] sm:$0xff]
    %v184 = vld [vmem:[#allocation4 + $0x70] sm:$0xff]
    %v185 = vld [vmem:[#allocation4 + $0x78] sm:$0xff]
    %v186 = vld [vmem:[#allocation4 + $0x80] sm:$0xff]
    %v187 = vld [vmem:[#allocation4 + $0x88] sm:$0xff]
    %v188 = vld [vmem:[#allocation4 + $0x90] sm:$0xff]
    %v189 = vld [vmem:[#allocation4 + $0x98] sm:$0xff]
    %v190 = vld [vmem:[#allocation4 + $0xa0] sm:$0xff]
    %v191 = vld [vmem:[#allocation4 + $0xa8] sm:$0xff]
    %v192 = vld [vmem:[#allocation4 + $0xb0] sm:$0xff]
    %v193 = vld [vmem:[#allocation4 + $0xb8] sm:$0xff]
    %v194 = vld [vmem:[#allocation4 + $0xc0] sm:$0xff]
    %v195 = vld [vmem:[#allocation4 + $0xc8] sm:$0xff]
    %v196 = vld [vmem:[#allocation4 + $0xd0] sm:$0xff]
    %v197 = vld [vmem:[#allocation4 + $0xd8] sm:$0xff]
    %v198 = vld [vmem:[#allocation4 + $0xe0] sm:$0xff]
    %v199 = vld [vmem:[#allocation4 + $0xe8] sm:$0xff]
    %v200 = vld [vmem:[#allocation4 + $0xf0] sm:$0xff]
    %v201 = vld [vmem:[#allocation4 + $0xf8] sm:$0xff]
    %v202 = vld [vmem:[#allocation4 + $0x100] sm:$0xff]
    %v203 = vld [vmem:[#allocation4 + $0x108] sm:$0xff]
    %v204 = vld [vmem:[#allocation4 + $0x110] sm:$0xff]
    %v205 = vld [vmem:[#allocation4 + $0x118] sm:$0xff]
    %v206 = vld [vmem:[#allocation4 + $0x120] sm:$0xff]
    %v207 = vld [vmem:[#allocation4 + $0x128] sm:$0xff]
    %v208 = vld [vmem:[#allocation4 + $0x130] sm:$0xff]
    %v209 = vld [vmem:[#allocation4 + $0x138] sm:$0xff]
    %v210 = vld [vmem:[#allocation4 + $0x140] sm:$0xff]
    %v211 = vld [vmem:[#allocation4 + $0x148] sm:$0xff]
    %v212 = vld [vmem:[#allocation4 + $0x150] sm:$0xff]
    %v213 = vld [vmem:[#allocation4 + $0x158] sm:$0xff]
    %v214 = vld [vmem:[#allocation4 + $0x160] sm:$0xff]
    %v215 = vld [vmem:[#allocation4 + $0x168] sm:$0xff]
    %v216 = vld [vmem:[#allocation4 + $0x170] sm:$0xff]
    %v217 = vld [vmem:[#allocation4 + $0x178] sm:$0xff]
    %v218 = vld [vmem:[#allocation4 + $0x180] sm:$0xff]
    %v219 = vld [vmem:[#allocation4 + $0x188] sm:$0xff]
    %v220 = vld [vmem:[#allocation4 + $0x190] sm:$0xff]
    %v221 = vld [vmem:[#allocation4 + $0x198] sm:$0xff]
    %v222 = vld [vmem:[#allocation4 + $0x1a0] sm:$0xff]
    %v223 = vld [vmem:[#allocation4 + $0x1a8] sm:$0xff]
    %v224 = vld [vmem:[#allocation4 + $0x1b0] sm:$0xff]
    %v225 = vld [vmem:[#allocation4 + $0x1b8] sm:$0xff]
    %v226 = vld [vmem:[#allocation4 + $0x1c0] sm:$0xff]
    %v227 = vld [vmem:[#allocation4 + $0x1c8] sm:$0xff]
    %v228 = vld [vmem:[#allocation4 + $0x1d0] sm:$0xff]
    %v229 = vld [vmem:[#allocation4 + $0x1d8] sm:$0xff]
    %v230 = vld [vmem:[#allocation4 + $0x1e0] sm:$0xff]
    %v231 = vld [vmem:[#allocation4 + $0x1e8] sm:$0xff]
    %v232 = vld [vmem:[#allocation4 + $0x1f0] sm:$0xff]
    %v233 = vld [vmem:[#allocation4 + $0x1f8] sm:$0xff]
    %v234 = vld [vmem:[%s4] sm:$0x3]
    %v236 = vlaneseq
    %v237 = vshrl.u32 %v236, 7
    %v238 = vsub.s32 0, %v237
    %v239 = vrot.slane %v234, %v238
    %v240 = vlaneseq
    %v241 = vshrl.u32 %v240, 7
    %v242 = vsub.s32 1, %v241
    %v243 = vrot.slane %v234, %v242
    %246 = vmatprep.subr.mxu0 %v171
    %247 = vmatpush1.msra.mxu0 %v170
    %248 = vmatprep.subr.mxu0 %v173
    %249 = vmatpush1.msra.mxu0 %v172
    %250 = vmatprep.subr.mxu0 %v175
    %251 = vmatpush1.msra.mxu0 %v174
    %252 = vmatprep.subr.mxu0 %v177
    %253 = vmatpush1.msra.mxu0 %v176
    %254 = vmatprep.subr.mxu0 %v179
    %255 = vmatpush1.msra.mxu0 %v178
    %256 = vmatprep.subr.mxu0 %v181
    %257 = vmatpush1.msra.mxu0 %v180
    %258 = vmatprep.subr.mxu0 %v183
    %259 = vmatpush1.msra.mxu0 %v182
    %260 = vmatprep.subr.mxu0 %v185
    %261 = vmatpush1.msra.mxu0 %v184
    %262 = vmatprep.subr.mxu0 %v187
    %263 = vmatpush1.msra.mxu0 %v186
    %264 = vmatprep.subr.mxu0 %v189
    %265 = vmatpush1.msra.mxu0 %v188
    %266 = vmatprep.subr.mxu0 %v191
    %267 = vmatpush1.msra.mxu0 %v190
    %268 = vmatprep.subr.mxu0 %v193
    %269 = vmatpush1.msra.mxu0 %v192
    %270 = vmatprep.subr.mxu0 %v195
    %271 = vmatpush1.msra.mxu0 %v194
    %272 = vmatprep.subr.mxu0 %v197
    %273 = vmatpush1.msra.mxu0 %v196
    %274 = vmatprep.subr.mxu0 %v199
    %275 = vmatpush1.msra.mxu0 %v198
    %276 = vmatprep.subr.mxu0 %v201
    %277 = vmatpush1.msra.mxu0 %v200
    %278 = vmatprep.subr.mxu0 %v203
    %279 = vmatpush1.msra.mxu0 %v202
    %280 = vmatprep.subr.mxu0 %v205
    %281 = vmatpush1.msra.mxu0 %v204
    %282 = vmatprep.subr.mxu0 %v207
    %283 = vmatpush1.msra.mxu0 %v206
    %284 = vmatprep.subr.mxu0 %v209
    %285 = vmatpush1.msra.mxu0 %v208
    %286 = vmatprep.subr.mxu0 %v211
    %287 = vmatpush1.msra.mxu0 %v210
    %288 = vmatprep.subr.mxu0 %v213
    %289 = vmatpush1.msra.mxu0 %v212
    %290 = vmatprep.subr.mxu0 %v215
    %291 = vmatpush1.msra.mxu0 %v214
    %292 = vmatprep.subr.mxu0 %v217
    %293 = vmatpush1.msra.mxu0 %v216
    %294 = vmatprep.subr.mxu0 %v219
    %295 = vmatpush1.msra.mxu0 %v218
    %296 = vmatprep.subr.mxu0 %v221
    %297 = vmatpush1.msra.mxu0 %v220
    %298 = vmatprep.subr.mxu0 %v223
    %299 = vmatpush1.msra.mxu0 %v222
    %300 = vmatprep.subr.mxu0 %v225
    %301 = vmatpush1.msra.mxu0 %v224
    %302 = vmatprep.subr.mxu0 %v227
    %303 = vmatpush1.msra.mxu0 %v226
    %304 = vmatprep.subr.mxu0 %v229
    %305 = vmatpush1.msra.mxu0 %v228
    %306 = vmatprep.subr.mxu0 %v231
    %307 = vmatpush1.msra.mxu0 %v230
    %308 = vmatprep.subr.mxu0 %v233
    %309 = vmatpush1.msra.mxu0 %v232
    %310 = vmatprep.mubr.f32.mxu0 %v169
    %311 = vmatmul.mubr.f32.gmra.mrb[0].mxu0 %v168
    %v312 = vpop.f32.mrb[0].mxu0
    %v313 = vadd.f32 %v239, %v312
    %v314 = vpop.f32.mrb[0].mxu0
    %v315 = vadd.f32 %v243, %v314
    %316 = vdwg.mxu0
    %v317 = vmax.f32 %v313, 0.0
    %v318 = vmax.f32 %v315, 0.0
    %v319 = vld [vmem:[%s5] sm:$0xff]
    %v320 = vld [vmem:[%s5 + $0x8] sm:$0xff]
    %v321 = vld [vmem:[%s5 + $0x10] sm:$0xff]
    %v322 = vld [vmem:[%s5 + $0x18] sm:$0xff]
    %v323 = vld [vmem:[%s5 + $0x20] sm:$0xff]
    %v324 = vld [vmem:[%s5 + $0x28] sm:$0xff]
    %v325 = vld [vmem:[%s5 + $0x30] sm:$0xff]
    %v326 = vld [vmem:[%s5 + $0x38] sm:$0xff]
    %v327 = vld [vmem:[%s5 + $0x40] sm:$0xff]
    %v328 = vld [vmem:[%s5 + $0x48] sm:$0xff]
    %v329 = vld [vmem:[%s5 + $0x50] sm:$0xff]
    %v330 = vld [vmem:[%s5 + $0x58] sm:$0xff]
    %v331 = vld [vmem:[%s5 + $0x60] sm:$0xff]
    %v332 = vld [vmem:[%s5 + $0x68] sm:$0xff]
    %v333 = vld [vmem:[%s5 + $0x70] sm:$0xff]
    %v334 = vld [vmem:[%s5 + $0x78] sm:$0xff]
    %v335 = vld [vmem:[%s5 + $0x80] sm:$0xff]
    %v336 = vld [vmem:[%s5 + $0x88] sm:$0xff]
    %v337 = vld [vmem:[%s5 + $0x90] sm:$0xff]
    %v338 = vld [vmem:[%s5 + $0x98] sm:$0xff]
    %v339 = vld [vmem:[%s5 + $0xa0] sm:$0xff]
    %v340 = vld [vmem:[%s5 + $0xa8] sm:$0xff]
    %v341 = vld [vmem:[%s5 + $0xb0] sm:$0xff]
    %v342 = vld [vmem:[%s5 + $0xb8] sm:$0xff]
    %v343 = vld [vmem:[%s5 + $0xc0] sm:$0xff]
    %v344 = vld [vmem:[%s5 + $0xc8] sm:$0xff]
    %v345 = vld [vmem:[%s5 + $0xd0] sm:$0xff]
    %v346 = vld [vmem:[%s5 + $0xd8] sm:$0xff]
    %v347 = vld [vmem:[%s5 + $0xe0] sm:$0xff]
    %v348 = vld [vmem:[%s5 + $0xe8] sm:$0xff]
    %v349 = vld [vmem:[%s5 + $0xf0] sm:$0xff]
    %v350 = vld [vmem:[%s5 + $0xf8] sm:$0xff]
    %v351 = vld [vmem:[%s6] sm:$0x1]
    %v353 = vlaneseq
    %v354 = vshrl.u32 %v353, 7
    %v355 = vsub.s32 0, %v354
    %v356 = vrot.slane %v351, %v355
    %358 = vmatprep.subr.mxu0 0.0
    %359 = vmatpush1.msra.mxu0 %v319
    %360 = vmatprep.subr.mxu0 0.0
    %361 = vmatpush1.msra.mxu0 %v320
    %362 = vmatprep.subr.mxu0 0.0
    %363 = vmatpush1.msra.mxu0 %v321
    %364 = vmatprep.subr.mxu0 0.0
    %365 = vmatpush1.msra.mxu0 %v322
    %366 = vmatprep.subr.mxu0 0.0
    %367 = vmatpush1.msra.mxu0 %v323
    %368 = vmatprep.subr.mxu0 0.0
    %369 = vmatpush1.msra.mxu0 %v324
    %370 = vmatprep.subr.mxu0 0.0
    %371 = vmatpush1.msra.mxu0 %v325
    %372 = vmatprep.subr.mxu0 0.0
    %373 = vmatpush1.msra.mxu0 %v326
    %374 = vmatprep.subr.mxu0 0.0
    %375 = vmatpush1.msra.mxu0 %v327
    %376 = vmatprep.subr.mxu0 0.0
    %377 = vmatpush1.msra.mxu0 %v328
    %378 = vmatprep.subr.mxu0 0.0
    %379 = vmatpush1.msra.mxu0 %v329
    %380 = vmatprep.subr.mxu0 0.0
    %381 = vmatpush1.msra.mxu0 %v330
    %382 = vmatprep.subr.mxu0 0.0
    %383 = vmatpush1.msra.mxu0 %v331
    %384 = vmatprep.subr.mxu0 0.0
    %385 = vmatpush1.msra.mxu0 %v332
    %386 = vmatprep.subr.mxu0 0.0
    %387 = vmatpush1.msra.mxu0 %v333
    %388 = vmatprep.subr.mxu0 0.0
    %389 = vmatpush1.msra.mxu0 %v334
    %390 = vmatprep.subr.mxu0 0.0
    %391 = vmatpush1.msra.mxu0 %v335
    %392 = vmatprep.subr.mxu0 0.0
    %393 = vmatpush1.msra.mxu0 %v336
    %394 = vmatprep.subr.mxu0 0.0
    %395 = vmatpush1.msra.mxu0 %v337
    %396 = vmatprep.subr.mxu0 0.0
    %397 = vmatpush1.msra.mxu0 %v338
    %398 = vmatprep.subr.mxu0 0.0
    %399 = vmatpush1.msra.mxu0 %v339
    %400 = vmatprep.subr.mxu0 0.0
    %401 = vmatpush1.msra.mxu0 %v340
    %402 = vmatprep.subr.mxu0 0.0
    %403 = vmatpush1.msra.mxu0 %v341
    %404 = vmatprep.subr.mxu0 0.0
    %405 = vmatpush1.msra.mxu0 %v342
    %406 = vmatprep.subr.mxu0 0.0
    %407 = vmatpush1.msra.mxu0 %v343
    %408 = vmatprep.subr.mxu0 0.0
    %409 = vmatpush1.msra.mxu0 %v344
    %410 = vmatprep.subr.mxu0 0.0
    %411 = vmatpush1.msra.mxu0 %v345
    %412 = vmatprep.subr.mxu0 0.0
    %413 = vmatpush1.msra.mxu0 %v346
    %414 = vmatprep.subr.mxu0 0.0
    %415 = vmatpush1.msra.mxu0 %v347
    %416 = vmatprep.subr.mxu0 0.0
    %417 = vmatpush1.msra.mxu0 %v348
    %418 = vmatprep.subr.mxu0 0.0
    %419 = vmatpush1.msra.mxu0 %v349
    %420 = vmatprep.subr.mxu0 0.0
    %421 = vmatpush1.msra.mxu0 %v350
    %422 = vmatprep.mubr.f32.mxu0 %v318
    %423 = vmatmul.mubr.f32.gmra.mrb[0].mxu0 %v317
    %v424 = vpop.f32.mrb[0].mxu0
    %v425 = vadd.f32 %v356, %v424
    %v426 = vpop.f32.mrb[0].mxu0
    %427 = vdwg.mxu0
    %vm428 = vcmask 15360
    %429 = vst.msk [vmem:[%s7] sm:$0xff] %vm428, %v425
    // Predicated region
    $region38: #{tpu_custom_call.1} parent=1 // pred_check
      _
    $region39: #{tpu_custom_call.1} parent=1 // pred_check_branch
      %431 = sbr.rel (0) target = $region41
    $region40: #{tpu_custom_call.1} parent=1 // pred_region
      _
    $region41: #{tpu_custom_call.1} parent=1 // pred_fallthru
      _
    // Predicated region
    $region42: #{tpu_custom_call.1} parent=1 // pred_check
      _
    $region43: #{tpu_custom_call.1} parent=1 // pred_check_branch
      %433 = sbr.rel (0) target = $region45
    $region44: #{tpu_custom_call.1} parent=1 // pred_region
      _
    $region45: #{tpu_custom_call.1} parent=1 // pred_fallthru
      _
    %434 = vsyncpa [#allocation3], 1
    %435 = vsyncpa [#allocation5], 1

</llo_original>
